<compile_context>
chip_gen: v7x
topology: tpu7x:2x2x1
jax: 0.10.0
libtpu: 0.0.40
codegen_flags: <defaults>
</compile_context>

<pallas_src>
import jax
import jax.numpy as jnp
from jax import lax
from jax.experimental import pallas as pl
from jax.experimental.pallas import tpu as pltpu


_LANE = 128
_SUBLANE_BY_ITEMSIZE = {4: 8, 2: 16, 1: 32}

_RESIDENT_W_BYTES = 8 * 1024 * 1024    # single-copy padded-W budget for the resident path
_VMEM_BUDGET = 28 * 1024 * 1024        # per-core pipeline footprint target (safe on v5e/v6e/v7x)


def _round_up(v, m):
    return (v + m - 1) // m * m


def _cdiv(a, b):
    return (a + b - 1) // b


def _sublane(dtype):
    return _SUBLANE_BY_ITEMSIZE.get(jnp.dtype(dtype).itemsize, 8)


def _pick_tile(dim, cap, align):
    """Pick a tile: multiple of `align`, <= cap, minimizing the covered extent
    ceil(dim/t)*t (i.e. wasted edge compute); ties go to the larger tile.
    If dim < align, return the full dim (full-dim block-shape exception)."""
    if dim <= align:
        return dim if dim < align else align
    cap = max(align, (cap // align) * align)
    best, best_cover = None, None
    t = align
    while t <= cap:
        cover = _round_up(dim, t)
        if best is None or cover < best_cover or (cover == best_cover and t > best):
            best, best_cover = t, cover
        t += align
    return best


# ----------------------------------------------------------------------------
# Kernel bodies
# ----------------------------------------------------------------------------

def _matmul_single_k_kernel(x_ref, w_ref, o_ref):
    # Used by the resident-weight path and any schedule with a single K block:
    # one dot, direct store, no accumulator scratch.
    o_ref[...] = lax.dot_general(
        x_ref[...],
        w_ref[...],
        dimension_numbers=(((1,), (1,)), ((), ())),   # x @ W.T, no transpose materialized
        preferred_element_type=jnp.float32,
    ).astype(o_ref.dtype)


def _matmul_acc_kernel(x_ref, w_ref, o_ref, acc_ref):
    @pl.when(pl.program_id(2) == 0)
    def _():
        acc_ref[...] = jnp.zeros_like(acc_ref)

    acc_ref[...] += lax.dot_general(
        x_ref[...],
        w_ref[...],
        dimension_numbers=(((1,), (1,)), ((), ())),
        preferred_element_type=jnp.float32,
    )

    @pl.when(pl.program_id(2) == pl.num_programs(2) - 1)
    def _():
        o_ref[...] = acc_ref[...].astype(o_ref.dtype)


# ----------------------------------------------------------------------------
# Wrapper
# ----------------------------------------------------------------------------

def value_forward(x, w, *, tm=512, tn=512, tk=512, tm_resident=1024):
    """Value.forward: x @ w.T with x (..., dim_embed), w (dim_hidden, dim_embed)."""
    *lead, E = x.shape
    H, E_w = w.shape
    assert E == E_w, "dim_embed mismatch"
    assert x.dtype == w.dtype, "x / weight dtype mismatch"

    x2 = x.reshape(-1, E)
    B = x2.shape[0]
    dtype = x.dtype
    isz = jnp.dtype(dtype).itemsize
    out_dtype = dtype
    o_isz = jnp.dtype(out_dtype).itemsize
    sub = _sublane(dtype)

    # VMEM buffer-layout (tile-rounded) extents used for footprint accounting.
    Hb = _round_up(H, sub)       # W sublane extent in VMEM
    Eb = _round_up(E, _LANE)     # lane extent of x / W buffers
    Hl = _round_up(H, _LANE)     # lane extent of the output buffer (resident path)

    w_buf_bytes = Hb * Eb * isz
    resident_fixed = 2 * w_buf_bytes                    # conservatively assume double-buffered
    per_row_bytes = 2 * Eb * isz + 2 * Hl * o_isz       # one M row of x-dbuf + out-dbuf

    use_resident = (
        w_buf_bytes <= _RESIDENT_W_BYTES
        and resident_fixed + sub * per_row_bytes <= _VMEM_BUDGET
    )

    if use_resident:
        # ---- Resident-weight path: W DMA'd once, no K axis, no accumulator ----
        bm_cap = (_VMEM_BUDGET - resident_fixed) // per_row_bytes
        bm_cap = max(sub, (bm_cap // sub) * sub)
        bm_cap = min(bm_cap, max(sub, (tm_resident // sub) * sub))
        if B <= bm_cap:
            if B >= 2 * sub:
                # >=2 M blocks so the "parallel" axis can shard across v7x's 2 TCs.
                bm = _round_up(_cdiv(B, 2), sub)
            else:
                bm = B                      # full-dim block (no alignment requirement)
        else:
            bm = _pick_tile(B, bm_cap, sub)
        nm = _cdiv(B, bm)

        grid = (nm,)
        in_specs = [
            pl.BlockSpec((bm, E), lambda i: (i, 0)),   # stream M blocks of x
            pl.BlockSpec((H, E), lambda i: (0, 0)),    # constant index -> W fetched from HBM once
        ]
        out_specs = pl.BlockSpec((bm, H), lambda i: (i, 0))
        scratch_shapes = []
        kernel = _matmul_single_k_kernel
        dims = ("parallel",)

        x_op, w_op = x2, w
        flops = 2 * (nm * bm) * H * E
        bytes_accessed = isz * (B * E + H * E) + o_isz * B * H
        footprint = resident_fixed + bm * per_row_bytes
    else:
        # ---- Tiled path: 2-D/3-D grid, f32 accumulator over K when needed ----
        bm = _pick_tile(B, tm, sub)
        bn = _pick_tile(H, tn, _LANE)
        # K must be covered exactly (out-of-range K would pull unspecified values
        # into *valid* outputs), so K is the only axis we ever zero-pad.
        if E <= max(tk, _LANE):
            bk, Ep = E, E                  # full-K block (full-dim exception), no pad
        else:
            bk = _pick_tile(E, tk, _LANE)
            Ep = _round_up(E, bk)
        x_op = x2 if Ep == E else jnp.pad(x2, ((0, 0), (0, Ep - E)))
        w_op = w if Ep == E else jnp.pad(w, ((0, 0), (0, Ep - E)))

        nm, nn, nk = _cdiv(B, bm), _cdiv(H, bn), Ep // bk
        if nk == 1:
            grid = (nm, nn)
            in_specs = [
                pl.BlockSpec((bm, bk), lambda i, j: (i, 0)),
                pl.BlockSpec((bn, bk), lambda i, j: (j, 0)),
            ]
            out_specs = pl.BlockSpec((bm, bn), lambda i, j: (i, j))
            scratch_shapes = []
            kernel = _matmul_single_k_kernel
            dims = ("parallel", "parallel")
        else:
            grid = (nm, nn, nk)
            in_specs = [
                pl.BlockSpec((bm, bk), lambda i, j, k: (i, k)),
                pl.BlockSpec((bn, bk), lambda i, j, k: (j, k)),
            ]
            out_specs = pl.BlockSpec((bm, bn), lambda i, j, k: (i, j))
            scratch_shapes = [pltpu.VMEM((bm, bn), jnp.float32)]
            kernel = _matmul_acc_kernel
            dims = ("parallel", "parallel", "arbitrary")

        flops = 2 * (nm * bm) * (nn * bn) * Ep
        # Actual tiled traffic: x re-read once per N block, W once per M block.
        bytes_accessed = isz * (B * Ep * nn + H * Ep * nm) + o_isz * B * H
        footprint = (2 * (bm * bk + bn * bk) * isz
                     + 2 * bm * bn * o_isz
                     + (bm * bn * 4 if nk > 1 else 0))

    vmem_limit = int(min(64 * 1024 * 1024,
                         max(32 * 1024 * 1024, footprint + 8 * 1024 * 1024)))

    cost = pl.CostEstimate(
        flops=int(flops),
        transcendentals=0,
        bytes_accessed=int(bytes_accessed),
    )

    out = pl.pallas_call(
        kernel,
        out_shape=jax.ShapeDtypeStruct((B, H), out_dtype),
        grid_spec=pltpu.PrefetchScalarGridSpec(
            num_scalar_prefetch=0,
            grid=grid,
            in_specs=in_specs,
            out_specs=out_specs,
            scratch_shapes=scratch_shapes,
        ),
        compiler_params=pltpu.CompilerParams(
            dimension_semantics=dims,
            vmem_limit_bytes=vmem_limit,
        ),
        cost_estimate=cost,
    )(x_op, w_op)

    return out.reshape(*lead, H)


if __name__ == "__main__":
    # --- small shapes implied by the module: dim_embed=32, dim_hidden=32, batch=8 ---
    batch, dim_embed, dim_hidden = 8, 32, 32
    key = jax.random.PRNGKey(0)
    kx, kw, kx2, kw2, kx3, kw3, kx4, kw4 = jax.random.split(key, 8)

    x = jax.random.normal(kx, (batch, dim_embed), dtype=jnp.float32)
    # nn.Linear-style kaiming-uniform bound: U(-1/sqrt(dim_embed), 1/sqrt(dim_embed)).
    bound = 1.0 / (dim_embed ** 0.5)
    w = jax.random.uniform(kw, (dim_hidden, dim_embed), dtype=jnp.float32,
                           minval=-bound, maxval=bound)
    out = value_forward(x, w)
    jax.block_until_ready(out)
    ref = x @ w.T
    assert out.shape == (batch, dim_hidden)
    assert jnp.allclose(out, ref, atol=1e-4, rtol=1e-4)

    # --- ragged B / H, resident-weight path: no padding, W DMA'd once ---
    B2, E2, H2 = 1030, 1024, 770
    b2 = 1.0 / (E2 ** 0.5)
    x_big = jax.random.normal(kx2, (B2, E2), dtype=jnp.float32)
    w_big = jax.random.uniform(kw2, (H2, E2), dtype=jnp.float32, minval=-b2, maxval=b2)
    out_big = value_forward(x_big, w_big)
    jax.block_until_ready(out_big)
    ref_big = x_big @ w_big.T
    assert out_big.shape == (B2, H2)
    assert jnp.allclose(out_big, ref_big, atol=2e-2, rtol=2e-2)

    # --- large weight (> resident budget): tiled path with f32 K accumulator ---
    B3, E3, H3 = 260, 1280, 2048
    b3 = 1.0 / (E3 ** 0.5)
    x_t = jax.random.normal(kx3, (B3, E3), dtype=jnp.float32)
    w_t = jax.random.uniform(kw3, (H3, E3), dtype=jnp.float32, minval=-b3, maxval=b3)
    out_t = value_forward(x_t, w_t)
    jax.block_until_ready(out_t)
    ref_t = x_t @ w_t.T
    assert out_t.shape == (B3, H3)
    assert jnp.allclose(out_t, ref_t, atol=2e-2, rtol=2e-2)

    # --- native bf16 MXU path (dtype-aware sublane rounding, f32 accumulation) ---
    B4, E4, H4 = 64, 256, 384
    b4 = 1.0 / (E4 ** 0.5)
    x_bf = jax.random.normal(kx4, (B4, E4), dtype=jnp.float32).astype(jnp.bfloat16)
    w_bf = jax.random.uniform(kw4, (H4, E4), dtype=jnp.float32,
                              minval=-b4, maxval=b4).astype(jnp.bfloat16)
    out_bf = value_forward(x_bf, w_bf)
    jax.block_until_ready(out_bf)
    ref_bf = x_bf.astype(jnp.float32) @ w_bf.astype(jnp.float32).T
    assert out_bf.shape == (B4, H4)
    assert jnp.allclose(out_bf.astype(jnp.float32), ref_bf, atol=5e-2, rtol=5e-2)

    print("KERNEL_OK")
</pallas_src>

<mosaic_0001>
module attributes {stable_mosaic.version = 11 : i64} {
  func.func @_matmul_single_k_kernel(%arg0: i32, %arg1: memref<8x32xf32, #tpu.memory_space<vmem>>, %arg2: memref<32x32xf32, #tpu.memory_space<vmem>>, %arg3: memref<8x32xf32, #tpu.memory_space<vmem>>) attributes {dimension_semantics = [#tpu.dimension_semantics<parallel>], iteration_bounds = array<i64: 1>, scalar_prefetch = 0 : i64, scratch_operands = 0 : i64, tpu.core_type = #tpu.core_type<tc>, window_params = [{transform_indices = @transform_0, window_bounds = array<i64: 8, 32>}, {pipeline_mode = #tpu.pipeline_mode<synchronous>, transform_indices = @transform_1, window_bounds = array<i64: 32, 32>}, {transform_indices = @transform_2, window_bounds = array<i64: 8, 32>}]} {
    %c0 = arith.constant 0 : index
    %c0_0 = arith.constant 0 : index
    %0 = vector.load %arg1[%c0, %c0_0] : memref<8x32xf32, #tpu.memory_space<vmem>>, vector<8x32xf32>
    %c0_1 = arith.constant 0 : index
    %c0_2 = arith.constant 0 : index
    %1 = vector.load %arg2[%c0_1, %c0_2] : memref<32x32xf32, #tpu.memory_space<vmem>>, vector<32x32xf32>
    %cst = arith.constant dense<0.000000e+00> : vector<8x32xf32>
    %2 = tpu.matmul %0, %1, %cst {dimension_numbers = #tpu.dot_dimension_numbers<[1], [1], [0], [0], [0, 0, 1, 0], [], []>} : vector<8x32xf32>, vector<32x32xf32>, vector<8x32xf32> -> vector<8x32xf32>
    %c0_3 = arith.constant 0 : index
    %c0_4 = arith.constant 0 : index
    %3 = vector.load %arg3[%c0_3, %c0_4] : memref<8x32xf32, #tpu.memory_space<vmem>>, vector<8x32xf32>
    tpu.vector_store %arg3[%c0_3, %c0_4], %2 {strides = array<i32>} : memref<8x32xf32, #tpu.memory_space<vmem>>, vector<8x32xf32>,
    return
  }
  func.func @transform_0(%arg0: i32) -> (i32, i32) {
    %c0_i32 = arith.constant 0 : i32
    %c0_i32_0 = arith.constant 0 : i32
    return %arg0, %c0_i32 : i32, i32
  }
  func.func @transform_1(%arg0: i32) -> (i32, i32) {
    %c0_i32 = arith.constant 0 : i32
    %c0_i32_0 = arith.constant 0 : i32
    %c0_i32_1 = arith.constant 0 : i32
    return %c0_i32, %c0_i32_0 : i32, i32
  }
  func.func @transform_2(%arg0: i32) -> (i32, i32) {
    %c0_i32 = arith.constant 0 : i32
    %c0_i32_0 = arith.constant 0 : i32
    return %arg0, %c0_i32 : i32, i32
  }
}

</mosaic_0001>

<llo_original>
// kernel: tpu_custom_call.1
$region0: #{tpu_custom_call.1}
  #allocation0 [shape = 'u32[]', space=smem, size = 0x4, offset = 0x4, fixed_abs, tag = 'smem constant byte address 0x4 - core index']
  #allocation1 [shape = 'u32[144,128]{1,0:T(1,128)}', space=vmem, size = 0x12000, scoped, tag = 'internal scratch']
  %s0 = inlined_call_operand.hbm [shape: f32[8,32], index: 0, kind: input, shape index: {}]
  %s1 = inlined_call_operand.hbm [shape: f32[32,32], index: 1, kind: input, shape index: {}]
  %s2 = inlined_call_operand.hbm [shape: f32[8,32], index: 2, kind: output, shape index: {}]
  %s3 = sld [smem:[#allocation0]]
  $region26: #{tpu_custom_call.1} parent=0
    _
  %s5 = ssub.s32 1, %s3
  %s6 = scalar_select 0, %s5, %s3
  $region1: #{tpu_custom_call.1} parent=0
    #allocation2 [shape = 'u8[4096]{0}', space=vmem, size = 0x1000, scoped, tag = 'input window, operand 0, single buffered']
    #allocation3 [shape = 's32[1]{0}', space=sflag, size = 0x4, scoped, tag = 'scoped memory for tpu_custom_call.1']
    #allocation4 [shape = 's32[1]{0}', space=sflag, size = 0x4, scoped, tag = 'scoped memory for tpu_custom_call.1']
    #allocation5 [shape = 'u8[16384]{0}', space=vmem, size = 0x4000, scoped, tag = 'input window, operand 1, single buffered']
    #allocation6 [shape = 's32[1]{0}', space=sflag, size = 0x4, scoped, tag = 'scoped memory for tpu_custom_call.1']
    #allocation7 [shape = 'u8[4096]{0}', space=vmem, size = 0x1000, scoped, tag = 'output window, operand 0, single buffered']
    %7 = vsyncpa [#allocation3], 0
    %8 = vsyncpa [#allocation6], 0
    %9 = vsyncpa [#allocation4], 0
    // Predicated region
    $region2: #{tpu_custom_call.1} parent=1 // pred_check
      _
    $region3: #{tpu_custom_call.1} parent=1 // pred_check_branch
      %11 = sbr.rel (0) target = $region5
    $region4: #{tpu_custom_call.1} parent=1 // pred_region
      %s13 = ssub.s32 128, 128
      %14 = vsyncadd [#allocation3], %s13
      %s16 = sshll.u32 [#allocation2], 4
      %s17 = int_to_ptr.vmem [resolvable:$true] %s16
      %19 = dma.hbm_to_vmem [thread:$0]  %s0, 128, %s17, [#allocation3]
    $region5: #{tpu_custom_call.1} parent=1 // pred_fallthru
      _
    // Predicated region
    $region6: #{tpu_custom_call.1} parent=1 // pred_check
      _
    $region7: #{tpu_custom_call.1} parent=1 // pred_check_branch
      %21 = sbr.rel (0) target = $region9
    $region8: #{tpu_custom_call.1} parent=1 // pred_region
      %s23 = ssub.s32 512, 512
      %24 = vsyncadd [#allocation6], %s23
      %s25 = sshll.u32 [#allocation5], 4
      %s26 = int_to_ptr.vmem [resolvable:$true] %s25
      %31 = dma.hbm_to_vmem [thread:$0]  %s1, 512, %s26, [#allocation6], 128, 128, 8
    $region9: #{tpu_custom_call.1} parent=1 // pred_fallthru
      _
    // Predicated region
    $region10: #{tpu_custom_call.1} parent=1 // pred_check
      _
    $region11: #{tpu_custom_call.1} parent=1 // pred_check_branch
      %33 = sbr.rel (0) target = $region13
    $region12: #{tpu_custom_call.1} parent=1 // pred_region
      %34 = dma.done [#allocation3], 128
    $region13: #{tpu_custom_call.1} parent=1 // pred_fallthru
      _
    // Predicated region
    $region14: #{tpu_custom_call.1} parent=1 // pred_check
      _
    $region15: #{tpu_custom_call.1} parent=1 // pred_check_branch
      %36 = sbr.rel (0) target = $region17
    $region16: #{tpu_custom_call.1} parent=1 // pred_region
      %37 = dma.done [#allocation6], 512
    $region17: #{tpu_custom_call.1} parent=1 // pred_fallthru
      _
    %v38 = vld [vmem:[#allocation2] sm:$0xff]
    %v39 = vld [vmem:[#allocation5] sm:$0xff]
    %v40 = vld [vmem:[#allocation5 + $0x8] sm:$0xff]
    %v41 = vld [vmem:[#allocation5 + $0x10] sm:$0xff]
    %v42 = vld [vmem:[#allocation5 + $0x18] sm:$0xff]
    %vm43 = vcmask 261120
    %v45 = vsel %vm43, %v38, 0
    %v48 = vsel %vm43, %v39, 0
    %v51 = vsel %vm43, %v40, 0
    %v54 = vsel %vm43, %v41, 0
    %v57 = vsel %vm43, %v42, 0
    %59 = vmatprep.subr.mxu0 0.0
    %60 = vmatpush1.xpose.msra.mxu0 %v48
    %61 = vmatprep.subr.mxu0 0.0
    %62 = vmatpush1.xpose.msra.mxu0 %v51
    %63 = vmatprep.subr.mxu0 0.0
    %64 = vmatpush1.xpose.msra.mxu0 %v54
    %65 = vmatprep.subr.mxu0 0.0
    %66 = vmatpush1.xpose.msra.mxu0 %v57
    %67 = vmatprep.subr.mxu0 0.0
    %68 = vmatpush1.xpose.msra.mxu0 0.0
    %69 = vmatprep.subr.mxu0 0.0
    %70 = vmatpush1.xpose.msra.mxu0 0.0
    %71 = vmatprep.subr.mxu0 0.0
    %72 = vmatpush1.xpose.msra.mxu0 0.0
    %73 = vmatprep.subr.mxu0 0.0
    %74 = vmatpush1.xpose.msra.mxu0 0.0
    %75 = vmatprep.subr.mxu0 0.0
    %76 = vmatpush1.xpose.msra.mxu0 0.0
    %77 = vmatprep.subr.mxu0 0.0
    %78 = vmatpush1.xpose.msra.mxu0 0.0
    %79 = vmatprep.subr.mxu0 0.0
    %80 = vmatpush1.xpose.msra.mxu0 0.0
    %81 = vmatprep.subr.mxu0 0.0
    %82 = vmatpush1.xpose.msra.mxu0 0.0
    %83 = vmatprep.subr.mxu0 0.0
    %84 = vmatpush1.xpose.msra.mxu0 0.0
    %85 = vmatprep.subr.mxu0 0.0
    %86 = vmatpush1.xpose.msra.mxu0 0.0
    %87 = vmatprep.subr.mxu0 0.0
    %88 = vmatpush1.xpose.msra.mxu0 0.0
    %89 = vmatprep.subr.mxu0 0.0
    %90 = vmatpush1.xpose.msra.mxu0 0.0
    %91 = vmatprep.subr.mxu0 0.0
    %92 = vmatpush1.xpose.msra.mxu0 0.0
    %93 = vmatprep.subr.mxu0 0.0
    %94 = vmatpush1.xpose.msra.mxu0 0.0
    %95 = vmatprep.subr.mxu0 0.0
    %96 = vmatpush1.xpose.msra.mxu0 0.0
    %97 = vmatprep.subr.mxu0 0.0
    %98 = vmatpush1.xpose.msra.mxu0 0.0
    %99 = vmatprep.subr.mxu0 0.0
    %100 = vmatpush1.xpose.msra.mxu0 0.0
    %101 = vmatprep.subr.mxu0 0.0
    %102 = vmatpush1.xpose.msra.mxu0 0.0
    %103 = vmatprep.subr.mxu0 0.0
    %104 = vmatpush1.xpose.msra.mxu0 0.0
    %105 = vmatprep.subr.mxu0 0.0
    %106 = vmatpush1.xpose.msra.mxu0 0.0
    %107 = vmatprep.subr.mxu0 0.0
    %108 = vmatpush1.xpose.msra.mxu0 0.0
    %109 = vmatprep.subr.mxu0 0.0
    %110 = vmatpush1.xpose.msra.mxu0 0.0
    %111 = vmatprep.subr.mxu0 0.0
    %112 = vmatpush1.xpose.msra.mxu0 0.0
    %113 = vmatprep.subr.mxu0 0.0
    %114 = vmatpush1.xpose.msra.mxu0 0.0
    %115 = vmatprep.subr.mxu0 0.0
    %116 = vmatpush1.xpose.msra.mxu0 0.0
    %117 = vmatprep.subr.mxu0 0.0
    %118 = vmatpush1.xpose.msra.mxu0 0.0
    %119 = vmatprep.subr.mxu0 0.0
    %120 = vmatpush1.xpose.msra.mxu0 0.0
    %121 = vmatprep.subr.mxu0 0.0
    %122 = vmatpush1.xpose.msra.mxu0 0.0
    %123 = vmatprep.mubr.f32.mxu0 0.0
    %124 = vmatmul.mubr.f32.gmra.mrb[0].mxu0 %v45
    %v125 = vpop.f32.mrb[0].mxu0
    %v126 = vadd.f32 0.0, %v125
    %v127 = vpop.f32.mrb[0].mxu0
    %128 = vdwg.mxu0
    %129 = vst.msk [vmem:[#allocation7] sm:$0xff] %vm43, %v126
    // Predicated region
    $region18: #{tpu_custom_call.1} parent=1 // pred_check
      _
    $region19: #{tpu_custom_call.1} parent=1 // pred_check_branch
      %131 = sbr.rel (0) target = $region21
    $region20: #{tpu_custom_call.1} parent=1 // pred_region
      %s133 = ssub.s32 128, 128
      %134 = vsyncadd [#allocation4], %s133
      %s136 = sshll.u32 [#allocation7], 4
      %s137 = int_to_ptr.vmem [resolvable:$true] %s136
      %139 = dma.vmem_to_hbm [thread:$0]  %s137, 128, %s2, [#allocation4]
    $region21: #{tpu_custom_call.1} parent=1 // pred_fallthru
      _
    // Predicated region
    $region22: #{tpu_custom_call.1} parent=1 // pred_check
      _
    $region23: #{tpu_custom_call.1} parent=1 // pred_check_branch
      %141 = sbr.rel (0) target = $region25
    $region24: #{tpu_custom_call.1} parent=1 // pred_region
      %142 = dma.done [#allocation4], 128
    $region25: #{tpu_custom_call.1} parent=1 // pred_fallthru
      _
    %143 = vsyncpa [#allocation3], 1
    %144 = vsyncpa [#allocation6], 1
    %145 = vsyncpa [#allocation4], 1

</llo_original>
